<compile_context>
chip_gen: v6e
topology: v6e:2x2x1
jax: 0.10.0
libtpu: 0.0.40
codegen_flags: <defaults>
</compile_context>

<pallas_src>
import functools
import math

import jax
import jax.numpy as jnp
from jax import lax
from jax.experimental import pallas as pl
from jax.experimental.pallas import tpu as pltpu


# ----------------------------------------------------------------------------
# Fused kernel: Linear1 + BatchNorm1d (training-mode batch stats) + ReLU + Linear2
# ----------------------------------------------------------------------------
def _projector_kernel(x_ref, w1_ref, gamma_ref, beta_ref, w2_ref, b2_ref,
                      o_ref, *, eps, inv_b):
    f32 = jnp.float32
    bf16 = jnp.bfloat16

    # x: (B, D_in) f32 -> bf16 for the MXU (tiny, cast on VPU in-kernel).
    x = x_ref[...].astype(bf16)

    # h = x @ W1^T, f32 accumulation. W1 keeps PyTorch layout (H, D_in):
    # contract dim 1 of both operands (NT matmul) -> no wrapper transpose.
    # Linear-1 bias omitted: exactly cancelled by the BN mean subtraction.
    h = lax.dot_general(x, w1_ref[...], (((1,), (1,)), ((), ())),
                        preferred_element_type=f32)              # (B, H) f32

    # One-pass BatchNorm1d training-mode statistics (biased variance), f32.
    mean = jnp.sum(h, axis=0, keepdims=True) * inv_b             # (1, H)
    ex2 = jnp.sum(h * h, axis=0, keepdims=True) * inv_b          # (1, H)
    var = ex2 - mean * mean
    inv_std = lax.rsqrt(var + eps)                               # EUP, not VALU divide
    bn = (h - mean) * (inv_std * gamma_ref[...]) + beta_ref[...]  # (B, H) f32

    r = jnp.maximum(bn, 0.0).astype(bf16)                        # ReLU -> bf16 MXU operand

    # out = relu(bn) @ W2^T + b2, W2 in PyTorch layout (D_out, H).
    out = lax.dot_general(r, w2_ref[...], (((1,), (1,)), ((), ())),
                          preferred_element_type=f32) + b2_ref[...]
    o_ref[...] = out.astype(o_ref.dtype)


# ----------------------------------------------------------------------------
# One-time (init-time) parameter preparation: no per-call transposes or casts.
# ----------------------------------------------------------------------------
def prepare_projector_params(params):
    hidden = params["w1"].shape[0]
    d_out = params["w2"].shape[0]
    return {
        "w1": params["w1"].astype(jnp.bfloat16),                 # (H, D_in), NT in-kernel
        "w2": params["w2"].astype(jnp.bfloat16),                 # (D_out, H), NT in-kernel
        "gamma": params["gamma"].reshape(1, hidden).astype(jnp.float32),
        "beta": params["beta"].reshape(1, hidden).astype(jnp.float32),
        "b2": params["b2"].reshape(1, d_out).astype(jnp.float32),
        # b1 intentionally dropped (exact cancellation by training-mode BN).
    }


# ----------------------------------------------------------------------------
# Wrapper
# ----------------------------------------------------------------------------
def projector_forward(x, prep, eps=1e-5):
    B = x.shape[0]
    x2 = x.reshape(B, -1).astype(jnp.float32)                    # PyTorch: x.reshape(B, -1)
    d_in = x2.shape[1]
    hidden, d_in_w = prep["w1"].shape
    d_out = prep["w2"].shape[0]
    assert d_in == d_in_w, (d_in, d_in_w)

    # All-operands-resident VMEM plan (no grid => no double buffering).
    # Keep well under the smallest default scoped VMEM (v5e ~16 MiB); for
    # larger input_dim tile over K with a VMEM f32 accumulator instead.
    operand_bytes = (x2.size * 4 + prep["w1"].size * 2 + prep["w2"].size * 2
                     + (prep["gamma"].size + prep["beta"].size
                        + prep["b2"].size + B * d_out) * 4)
    assert operand_bytes < 12 * 1024 * 1024, operand_bytes
    # TODO(synk): add a K-tiled grid (P3 accumulator pattern) for large input_dim.

    vmem = pl.BlockSpec(memory_space=pltpu.MemorySpace.VMEM)
    kernel = functools.partial(_projector_kernel, eps=float(eps), inv_b=1.0 / B)

    out = pl.pallas_call(
        kernel,
        out_shape=jax.ShapeDtypeStruct((B, d_out), jnp.float32),
        in_specs=[vmem, vmem, vmem, vmem, vmem, vmem],
        out_specs=vmem,
    )(x2, prep["w1"], prep["gamma"], prep["beta"], prep["w2"], prep["b2"])

    return out.reshape(B, -1)                                    # PyTorch: x.reshape(B, -1)


# ----------------------------------------------------------------------------
# Pure-JAX f32 reference (mirrors the PyTorch forward, training-mode BN, with b1)
# ----------------------------------------------------------------------------
def projector_reference(x, params, eps=1e-5):
    B = x.shape[0]
    x2 = x.reshape(B, -1).astype(jnp.float32)
    h = x2 @ params["w1"].T + params["b1"]
    mean = jnp.mean(h, axis=0)
    var = jnp.mean(jnp.square(h - mean), axis=0)                 # biased variance (train mode)
    bn = (h - mean) / jnp.sqrt(var + eps) * params["gamma"] + params["beta"]
    out = jnp.maximum(bn, 0.0) @ params["w2"].T + params["b2"]
    return out.reshape(B, -1)


# ----------------------------------------------------------------------------
if __name__ == "__main__":
    # Small shapes consistent with Projector(input_dim, output_dim, hidden_size).
    B = 8
    input_dim, hidden_size, output_dim = 128, 256, 128
    x_shape = (B, 4, 4, 8)                                       # flattens to (B, 128)

    key = jax.random.PRNGKey(0)
    k1, k2, k3, k4, k5 = jax.random.split(key, 5)

    def uinit(k, shape, fan_in):
        b = 1.0 / math.sqrt(fan_in)
        return jax.random.uniform(k, shape, jnp.float32, -b, b)

    params = {
        "w1": uinit(k1, (hidden_size, input_dim), input_dim),      # l1.weight
        "b1": uinit(k2, (hidden_size,), input_dim),                # l1.bias
        "gamma": jnp.ones((hidden_size,), jnp.float32),            # bn.weight
        "beta": jnp.zeros((hidden_size,), jnp.float32),            # bn.bias
        "w2": uinit(k3, (output_dim, hidden_size), hidden_size),   # l2.weight
        "b2": uinit(k4, (output_dim,), hidden_size),               # l2.bias
    }

    x = jax.random.normal(k5, x_shape, jnp.float32)

    prep = prepare_projector_params(params)                       # one-time, not per-call
    out = projector_forward(x, prep)
    out = jax.block_until_ready(out)

    ref = projector_reference(x, params)
    assert out.shape == (B, output_dim), out.shape
    # bf16 MXU operands with f32 accumulation vs full-f32 reference.
    assert jnp.allclose(out, ref, rtol=2e-2, atol=2e-2), (
        f"max abs diff {jnp.max(jnp.abs(out - ref))}")

    print("KERNEL_OK")
</pallas_src>

<mosaic_0001>
module attributes {stable_mosaic.version = 11 : i64} {
  func.func @_projector_kernel(%arg0: memref<8x128xf32, #tpu.memory_space<vmem>>, %arg1: memref<256x128xbf16, #tpu.memory_space<vmem>>, %arg2: memref<1x256xf32, #tpu.memory_space<vmem>>, %arg3: memref<1x256xf32, #tpu.memory_space<vmem>>, %arg4: memref<128x256xbf16, #tpu.memory_space<vmem>>, %arg5: memref<1x128xf32, #tpu.memory_space<vmem>>, %arg6: memref<8x128xf32, #tpu.memory_space<vmem>>) attributes {dimension_semantics = [], scalar_prefetch = 0 : i64, scratch_operands = 0 : i64, tpu.core_type = #tpu.core_type<tc>} {
    %c0 = arith.constant 0 : index
    %c0_0 = arith.constant 0 : index
    %0 = vector.load %arg0[%c0, %c0_0] : memref<8x128xf32, #tpu.memory_space<vmem>>, vector<8x128xf32>
    %1 = arith.truncf %0 : vector<8x128xf32> to vector<8x128xbf16>
    %c0_1 = arith.constant 0 : index
    %c0_2 = arith.constant 0 : index
    %2 = vector.load %arg1[%c0_1, %c0_2] : memref<256x128xbf16, #tpu.memory_space<vmem>>, vector<256x128xbf16>
    %cst = arith.constant dense<0.000000e+00> : vector<8x256xf32>
    %3 = tpu.matmul %1, %2, %cst {dimension_numbers = #tpu.dot_dimension_numbers<[1], [1], [0], [0], [0, 0, 1, 0], [], []>} : vector<8x128xbf16>, vector<256x128xbf16>, vector<8x256xf32> -> vector<8x256xf32>
    %cst_3 = arith.constant dense<0.000000e+00> : vector<256xf32>
    %4 = vector.multi_reduction <add>, %3, %cst_3 [0] : vector<8x256xf32> to vector<256xf32>
    %5 = vector.shape_cast %4 : vector<256xf32> to vector<1x256xf32>
    %cst_4 = arith.constant 1.250000e-01 : f32
    %6 = vector.broadcast %cst_4 : f32 to vector<1x256xf32>
    %7 = arith.mulf %5, %6 : vector<1x256xf32>
    %8 = arith.mulf %3, %3 : vector<8x256xf32>
    %cst_5 = arith.constant dense<0.000000e+00> : vector<256xf32>
    %9 = vector.multi_reduction <add>, %8, %cst_5 [0] : vector<8x256xf32> to vector<256xf32>
    %10 = vector.shape_cast %9 : vector<256xf32> to vector<1x256xf32>
    %cst_6 = arith.constant 1.250000e-01 : f32
    %11 = vector.broadcast %cst_6 : f32 to vector<1x256xf32>
    %12 = arith.mulf %10, %11 : vector<1x256xf32>
    %13 = arith.mulf %7, %7 : vector<1x256xf32>
    %14 = arith.subf %12, %13 : vector<1x256xf32>
    %cst_7 = arith.constant 9.99999974E-6 : f32
    %15 = vector.broadcast %cst_7 : f32 to vector<1x256xf32>
    %16 = arith.addf %14, %15 : vector<1x256xf32>
    %17 = math.rsqrt %16 : vector<1x256xf32>
    %18 = vector.broadcast %7 : vector<1x256xf32> to vector<8x256xf32>
    %19 = arith.subf %3, %18 : vector<8x256xf32>
    %c0_8 = arith.constant 0 : index
    %c0_9 = arith.constant 0 : index
    %20 = vector.load %arg2[%c0_8, %c0_9] : memref<1x256xf32, #tpu.memory_space<vmem>>, vector<1x256xf32>
    %21 = arith.mulf %17, %20 : vector<1x256xf32>
    %22 = vector.broadcast %21 : vector<1x256xf32> to vector<8x256xf32>
    %23 = arith.mulf %19, %22 : vector<8x256xf32>
    %c0_10 = arith.constant 0 : index
    %c0_11 = arith.constant 0 : index
    %24 = vector.load %arg3[%c0_10, %c0_11] : memref<1x256xf32, #tpu.memory_space<vmem>>, vector<1x256xf32>
    %25 = vector.broadcast %24 : vector<1x256xf32> to vector<8x256xf32>
    %26 = arith.addf %23, %25 : vector<8x256xf32>
    %cst_12 = arith.constant 0.000000e+00 : f32
    %27 = vector.broadcast %cst_12 : f32 to vector<8x256xf32>
    %28 = arith.maximumf %26, %27 : vector<8x256xf32>
    %29 = arith.truncf %28 : vector<8x256xf32> to vector<8x256xbf16>
    %c0_13 = arith.constant 0 : index
    %c0_14 = arith.constant 0 : index
    %30 = vector.load %arg4[%c0_13, %c0_14] : memref<128x256xbf16, #tpu.memory_space<vmem>>, vector<128x256xbf16>
    %cst_15 = arith.constant dense<0.000000e+00> : vector<8x128xf32>
    %31 = tpu.matmul %29, %30, %cst_15 {dimension_numbers = #tpu.dot_dimension_numbers<[1], [1], [0], [0], [0, 0, 1, 0], [], []>} : vector<8x256xbf16>, vector<128x256xbf16>, vector<8x128xf32> -> vector<8x128xf32>
    %c0_16 = arith.constant 0 : index
    %c0_17 = arith.constant 0 : index
    %32 = vector.load %arg5[%c0_16, %c0_17] : memref<1x128xf32, #tpu.memory_space<vmem>>, vector<1x128xf32>
    %33 = vector.broadcast %32 : vector<1x128xf32> to vector<8x128xf32>
    %34 = arith.addf %31, %33 : vector<8x128xf32>
    %c0_18 = arith.constant 0 : index
    %c0_19 = arith.constant 0 : index
    %35 = vector.load %arg6[%c0_18, %c0_19] : memref<8x128xf32, #tpu.memory_space<vmem>>, vector<8x128xf32>
    tpu.vector_store %arg6[%c0_18, %c0_19], %34 {strides = array<i32>} : memref<8x128xf32, #tpu.memory_space<vmem>>, vector<8x128xf32>,
    return
  }
}

</mosaic_0001>

<llo_original>
// kernel: tpu_custom_call.1
$region0: #{tpu_custom_call.1}
  #allocation0 [shape = 'u32[]', space=smem, size = 0x4, offset = 0x4, fixed_abs, tag = 'smem constant byte address 0x4 - core index']
  #allocation1 [shape = 'u32[144,128]{1,0:T(1,128)}', space=vmem, size = 0x12000, scoped, tag = 'internal scratch']
  %s0 = inlined_call_operand.hbm [shape: f32[8,128], index: 0, kind: input, shape index: {}]
  %s1 = inlined_call_operand.hbm [shape: bf16[256,128], index: 1, kind: input, shape index: {}]
  %s2 = inlined_call_operand.vmem [shape: f32[1,256], index: 2, kind: input, shape index: {}]
  %s3 = inlined_call_operand.vmem [shape: f32[1,256], index: 3, kind: input, shape index: {}]
  %s4 = inlined_call_operand.hbm [shape: bf16[128,256], index: 4, kind: input, shape index: {}]
  %s5 = inlined_call_operand.vmem [shape: f32[1,128], index: 5, kind: input, shape index: {}]
  %s6 = inlined_call_operand.hbm [shape: f32[8,128], index: 6, kind: output, shape index: {}]
  %s7 = sld [smem:[#allocation0]]
  $region46: #{tpu_custom_call.1} parent=0
    _
  %s9 = ssub.s32 1, %s7
  %s10 = scalar_select 0, %s9, %s7
  $region1: #{tpu_custom_call.1} parent=0
    #allocation2 [shape = 'u8[4096]{0}', space=vmem, size = 0x1000, scoped, tag = 'input window, operand 0, single buffered']
    #allocation3 [shape = 's32[1]{0}', space=sflag, size = 0x4, scoped, tag = 'scoped memory for tpu_custom_call.1']
    #allocation4 [shape = 's32[1]{0}', space=sflag, size = 0x4, scoped, tag = 'scoped memory for tpu_custom_call.1']
    #allocation5 [shape = 'u8[65536]{0}', space=vmem, size = 0x10000, scoped, tag = 'input window, operand 1, single buffered']
    #allocation6 [shape = 's32[1]{0}', space=sflag, size = 0x4, scoped, tag = 'scoped memory for tpu_custom_call.1']
    #allocation7 [shape = 'u8[65536]{0}', space=vmem, size = 0x10000, scoped, tag = 'input window, operand 4, single buffered']
    #allocation8 [shape = 'u8[4096]{0}', space=vmem, size = 0x1000, scoped, tag = 'output window, operand 0, single buffered']
    %11 = vsyncpa [#allocation3], 0
    %12 = vsyncpa [#allocation6], 0
    %13 = vsyncpa [#allocation4], 0
    // Predicated region
    $region2: #{tpu_custom_call.1} parent=1 // pred_check
      _
    $region3: #{tpu_custom_call.1} parent=1 // pred_check_branch
      %15 = sbr.rel (0) target = $region5
    $region4: #{tpu_custom_call.1} parent=1 // pred_region
      %s17 = ssub.s32 128, 128
      %18 = vsyncadd [#allocation3], %s17
      %s20 = sshll.u32 [#allocation2], 4
      %s21 = int_to_ptr.vmem [resolvable:$true] %s20
      %23 = dma.hbm_to_vmem [thread:$0]  %s0, 128, %s21, [#allocation3]
    $region5: #{tpu_custom_call.1} parent=1 // pred_fallthru
      _
    // Predicated region
    $region6: #{tpu_custom_call.1} parent=1 // pred_check
      _
    $region7: #{tpu_custom_call.1} parent=1 // pred_check_branch
      %25 = sbr.rel (0) target = $region9
    $region8: #{tpu_custom_call.1} parent=1 // pred_region
      %s27 = ssub.s32 2048, 2048
      %28 = vsyncadd [#allocation6], %s27
      %s29 = sshll.u32 [#allocation5], 4
      %s30 = int_to_ptr.vmem [resolvable:$true] %s29
      %35 = dma.hbm_to_vmem [thread:$0]  %s1, 2048, %s30, [#allocation6], 64, 64, 4
    $region9: #{tpu_custom_call.1} parent=1 // pred_fallthru
      _
    // Predicated region
    $region10: #{tpu_custom_call.1} parent=1 // pred_check
      _
    $region11: #{tpu_custom_call.1} parent=1 // pred_check_branch
      %37 = sbr.rel (0) target = $region13
    $region12: #{tpu_custom_call.1} parent=1 // pred_region
      _
    $region13: #{tpu_custom_call.1} parent=1 // pred_fallthru
      _
    // Predicated region
    $region14: #{tpu_custom_call.1} parent=1 // pred_check
      _
    $region15: #{tpu_custom_call.1} parent=1 // pred_check_branch
      %39 = sbr.rel (0) target = $region17
    $region16: #{tpu_custom_call.1} parent=1 // pred_region
      _
    $region17: #{tpu_custom_call.1} parent=1 // pred_fallthru
      _
    // Predicated region
    $region18: #{tpu_custom_call.1} parent=1 // pred_check
      _
    $region19: #{tpu_custom_call.1} parent=1 // pred_check_branch
      %41 = sbr.rel (0) target = $region21
    $region20: #{tpu_custom_call.1} parent=1 // pred_region
      %s43 = ssub.s32 2048, 2048
      %44 = vsyncadd [#allocation6], %s43
      %s45 = sshll.u32 [#allocation7], 4
      %s46 = int_to_ptr.vmem [resolvable:$true] %s45
      %51 = dma.hbm_to_vmem [thread:$0]  %s4, 2048, %s46, [#allocation6], 128, 128, 8
    $region21: #{tpu_custom_call.1} parent=1 // pred_fallthru
      _
    // Predicated region
    $region22: #{tpu_custom_call.1} parent=1 // pred_check
      _
    $region23: #{tpu_custom_call.1} parent=1 // pred_check_branch
      %53 = sbr.rel (0) target = $region25
    $region24: #{tpu_custom_call.1} parent=1 // pred_region
      _
    $region25: #{tpu_custom_call.1} parent=1 // pred_fallthru
      _
    // Predicated region
    $region26: #{tpu_custom_call.1} parent=1 // pred_check
      _
    $region27: #{tpu_custom_call.1} parent=1 // pred_check_branch
      %55 = sbr.rel (0) target = $region29
    $region28: #{tpu_custom_call.1} parent=1 // pred_region
      %56 = dma.done [#allocation3], 128
    $region29: #{tpu_custom_call.1} parent=1 // pred_fallthru
      _
    // Predicated region
    $region30: #{tpu_custom_call.1} parent=1 // pred_check
      _
    $region31: #{tpu_custom_call.1} parent=1 // pred_check_branch
      %58 = sbr.rel (0) target = $region33
    $region32: #{tpu_custom_call.1} parent=1 // pred_region
      %59 = dma.done [#allocation6], 2048
    $region33: #{tpu_custom_call.1} parent=1 // pred_fallthru
      _
    // Predicated region
    $region34: #{tpu_custom_call.1} parent=1 // pred_check
      _
    $region35: #{tpu_custom_call.1} parent=1 // pred_check_branch
      %61 = sbr.rel (0) target = $region37
    $region36: #{tpu_custom_call.1} parent=1 // pred_region
      %62 = dma.done [#allocation6], 2048
    $region37: #{tpu_custom_call.1} parent=1 // pred_fallthru
      _
    %v64 = vld [vmem:[#allocation2] sm:$0xff]
    %v65 = vpack.c.bf16 %v64, %v64
    %v66 = vld [vmem:[#allocation5] sm:$0xf]
    %v67 = vld [vmem:[#allocation5 + $0x4] sm:$0xf]
    %v68 = vld [vmem:[#allocation5 + $0x8] sm:$0xf]
    %v69 = vld [vmem:[#allocation5 + $0xc] sm:$0xf]
    %v70 = vld [vmem:[#allocation5 + $0x10] sm:$0xf]
    %v71 = vld [vmem:[#allocation5 + $0x14] sm:$0xf]
    %v72 = vld [vmem:[#allocation5 + $0x18] sm:$0xf]
    %v73 = vld [vmem:[#allocation5 + $0x1c] sm:$0xf]
    %v74 = vld [vmem:[#allocation5 + $0x20] sm:$0xf]
    %v75 = vld [vmem:[#allocation5 + $0x24] sm:$0xf]
    %v76 = vld [vmem:[#allocation5 + $0x28] sm:$0xf]
    %v77 = vld [vmem:[#allocation5 + $0x2c] sm:$0xf]
    %v78 = vld [vmem:[#allocation5 + $0x30] sm:$0xf]
    %v79 = vld [vmem:[#allocation5 + $0x34] sm:$0xf]
    %v80 = vld [vmem:[#allocation5 + $0x38] sm:$0xf]
    %v81 = vld [vmem:[#allocation5 + $0x3c] sm:$0xf]
    %v82 = vld [vmem:[#allocation5 + $0x40] sm:$0xf]
    %v83 = vld [vmem:[#allocation5 + $0x44] sm:$0xf]
    %v84 = vld [vmem:[#allocation5 + $0x48] sm:$0xf]
    %v85 = vld [vmem:[#allocation5 + $0x4c] sm:$0xf]
    %v86 = vld [vmem:[#allocation5 + $0x50] sm:$0xf]
    %v87 = vld [vmem:[#allocation5 + $0x54] sm:$0xf]
    %v88 = vld [vmem:[#allocation5 + $0x58] sm:$0xf]
    %v89 = vld [vmem:[#allocation5 + $0x5c] sm:$0xf]
    %v90 = vld [vmem:[#allocation5 + $0x60] sm:$0xf]
    %v91 = vld [vmem:[#allocation5 + $0x64] sm:$0xf]
    %v92 = vld [vmem:[#allocation5 + $0x68] sm:$0xf]
    %v93 = vld [vmem:[#allocation5 + $0x6c] sm:$0xf]
    %v94 = vld [vmem:[#allocation5 + $0x70] sm:$0xf]
    %v95 = vld [vmem:[#allocation5 + $0x74] sm:$0xf]
    %v96 = vld [vmem:[#allocation5 + $0x78] sm:$0xf]
    %v97 = vld [vmem:[#allocation5 + $0x7c] sm:$0xf]
    %v130 = vunpack.c.l.b16 %v66
    %v131 = vunpack.c.l.b16 %v67
    %v132 = vunpack.c.l.b16 %v68
    %v133 = vunpack.c.l.b16 %v69
    %v134 = vunpack.c.l.b16 %v70
    %v135 = vunpack.c.l.b16 %v71
    %v136 = vunpack.c.l.b16 %v72
    %v137 = vunpack.c.l.b16 %v73
    %v138 = vunpack.c.l.b16 %v74
    %v139 = vunpack.c.l.b16 %v75
    %v140 = vunpack.c.l.b16 %v76
    %v141 = vunpack.c.l.b16 %v77
    %v142 = vunpack.c.l.b16 %v78
    %v143 = vunpack.c.l.b16 %v79
    %v144 = vunpack.c.l.b16 %v80
    %v145 = vunpack.c.l.b16 %v81
    %v146 = vunpack.c.l.b16 %v82
    %v147 = vunpack.c.l.b16 %v83
    %v148 = vunpack.c.l.b16 %v84
    %v149 = vunpack.c.l.b16 %v85
    %v150 = vunpack.c.l.b16 %v86
    %v151 = vunpack.c.l.b16 %v87
    %v152 = vunpack.c.l.b16 %v88
    %v153 = vunpack.c.l.b16 %v89
    %v154 = vunpack.c.l.b16 %v90
    %v155 = vunpack.c.l.b16 %v91
    %v156 = vunpack.c.l.b16 %v92
    %v157 = vunpack.c.l.b16 %v93
    %v158 = vunpack.c.l.b16 %v94
    %v159 = vunpack.c.l.b16 %v95
    %v160 = vunpack.c.l.b16 %v96
    %v161 = vunpack.c.l.b16 %v97
    %v162 = vpack.c.b16 %v131, %v130
    %v163 = vpack.c.b16 %v133, %v132
    %v164 = vpack.c.b16 %v135, %v134
    %v165 = vpack.c.b16 %v137, %v136
    %v166 = vpack.c.b16 %v139, %v138
    %v167 = vpack.c.b16 %v141, %v140
    %v168 = vpack.c.b16 %v143, %v142
    %v169 = vpack.c.b16 %v145, %v144
    %v170 = vpack.c.b16 %v147, %v146
    %v171 = vpack.c.b16 %v149, %v148
    %v172 = vpack.c.b16 %v151, %v150
    %v173 = vpack.c.b16 %v153, %v152
    %v174 = vpack.c.b16 %v155, %v154
    %v175 = vpack.c.b16 %v157, %v156
    %v176 = vpack.c.b16 %v159, %v158
    %v177 = vpack.c.b16 %v161, %v160
    %194 = vmatprep.subr.bf16.mxu0 0
    %195 = vmatpush1.bf16.xpose.msra.mxu0 %v169
    %196 = vmatprep.subr.bf16.mxu0 0
    %197 = vmatpush1.bf16.xpose.msra.mxu0 %v168
    %198 = vmatprep.subr.bf16.mxu0 0
    %199 = vmatpush1.bf16.xpose.msra.mxu0 %v167
    %200 = vmatprep.subr.bf16.mxu0 0
    %201 = vmatpush1.bf16.xpose.msra.mxu0 %v166
    %202 = vmatprep.subr.bf16.mxu0 0
    %203 = vmatpush1.bf16.xpose.msra.mxu0 %v165
    %204 = vmatprep.subr.bf16.mxu0 0
    %205 = vmatpush1.bf16.xpose.msra.mxu0 %v164
    %206 = vmatprep.subr.bf16.mxu0 0
    %207 = vmatpush1.bf16.xpose.msra.mxu0 %v163
    %208 = vmatprep.subr.bf16.mxu0 0
    %209 = vmatpush1.bf16.xpose.msra.mxu0 %v162
    %210 = vmatprep.subr.bf16.mxu0 0
    %211 = vmatpush2.bf16.xpose.msra.mxu0 %v177
    %212 = vmatprep.subr.bf16.mxu0 0
    %213 = vmatpush2.bf16.xpose.msra.mxu0 %v176
    %214 = vmatprep.subr.bf16.mxu0 0
    %215 = vmatpush2.bf16.xpose.msra.mxu0 %v175
    %216 = vmatprep.subr.bf16.mxu0 0
    %217 = vmatpush2.bf16.xpose.msra.mxu0 %v174
    %218 = vmatprep.subr.bf16.mxu0 0
    %219 = vmatpush2.bf16.xpose.msra.mxu0 %v173
    %220 = vmatprep.subr.bf16.mxu0 0
    %221 = vmatpush2.bf16.xpose.msra.mxu0 %v172
    %222 = vmatprep.subr.bf16.mxu0 0
    %223 = vmatpush2.bf16.xpose.msra.mxu0 %v171
    %224 = vmatprep.subr.bf16.mxu0 0
    %225 = vmatpush2.bf16.xpose.msra.mxu0 %v170
    %226 = vmatprep.mubr.bf16.mxu0 0
    %227 = vmatmul.mubr.bf16.gmra.mxu0 %v65
    %v228 = vpop.f32.mrf.mxu0
    %v229 = vadd.f32 0.0, %v228
    %v230 = vpop.f32.mrf.mxu0
    %v231 = vadd.f32 0.0, %v230
    %v232 = vpop.f32.mrf.mxu0
    %v233 = vpop.f32.mrf.mxu0
    %234 = vdwg.mxu0
    %v235 = vrot.slane %v229, 4
    %v236 = vadd.f32 %v229, %v235
    %v237 = vrot.slane %v236, 2
    %v238 = vadd.f32 %v236, %v237
    %v239 = vrot.slane %v238, 1
    %v240 = vadd.f32 %v238, %v239
    %v241 = vrot.slane %v231, 4
    %v242 = vadd.f32 %v231, %v241
    %v243 = vrot.slane %v242, 2
    %v244 = vadd.f32 %v242, %v243
    %v245 = vrot.slane %v244, 1
    %v246 = vadd.f32 %v244, %v245
    %v247 = vmul.f32 %v240, 0.125
    %v248 = vmul.f32 %v246, 0.125
    %v249 = vmul.f32 %v229, %v229
    %v250 = vmul.f32 %v231, %v231
    %v251 = vrot.slane %v249, 4
    %v252 = vadd.f32 %v249, %v251
    %v253 = vrot.slane %v252, 2
    %v254 = vadd.f32 %v252, %v253
    %v255 = vrot.slane %v254, 1
    %v256 = vadd.f32 %v254, %v255
    %v257 = vrot.slane %v250, 4
    %v258 = vadd.f32 %v250, %v257
    %v259 = vrot.slane %v258, 2
    %v260 = vadd.f32 %v258, %v259
    %v261 = vrot.slane %v260, 1
    %v262 = vadd.f32 %v260, %v261
    %v263 = vmul.f32 %v256, 0.125
    %v264 = vmul.f32 %v262, 0.125
    %v265 = vmul.f32 %v247, %v247
    %v266 = vmul.f32 %v248, %v248
    %v267 = vsub.f32 %v263, %v265
    %v268 = vsub.f32 %v264, %v266
    %v269 = vadd.f32 %v267, 1e-05
    %v270 = vadd.f32 %v268, 1e-05
    %v271 = vrsqrt.pop %v269
    %v272 = vrsqrt.pop %v270
    %v273 = vsub.f32 %v229, %v247
    %v274 = vsub.f32 %v231, %v248
    %v275 = vld [vmem:[%s2] sm:$0x3]
    %v277 = vlaneseq
    %v278 = vshrl.u32 %v277, 7
    %v279 = vsub.s32 0, %v278
    %v280 = vrot.slane %v275, %v279
    %v281 = vlaneseq
    %v282 = vshrl.u32 %v281, 7
    %v283 = vsub.s32 1, %v282
    %v284 = vrot.slane %v275, %v283
    %v287 = vmul.f32 %v271, %v280
    %v288 = vmul.f32 %v272, %v284
    %v289 = vlaneseq
    %v290 = vshrl.u32 %v289, 7
    %v291 = vsub.s32 0, %v290
    %v292 = vrot.slane %v287, %v291
    %v293 = vlaneseq
    %v294 = vshrl.u32 %v293, 7
    %v295 = vsub.s32 0, %v294
    %v296 = vrot.slane %v288, %v295
    %v297 = vmul.f32 %v273, %v292
    %v298 = vmul.f32 %v274, %v296
    %v299 = vld [vmem:[%s3] sm:$0x3]
    %v301 = vlaneseq
    %v302 = vshrl.u32 %v301, 7
    %v303 = vsub.s32 0, %v302
    %v304 = vrot.slane %v299, %v303
    %v305 = vlaneseq
    %v306 = vshrl.u32 %v305, 7
    %v307 = vsub.s32 1, %v306
    %v308 = vrot.slane %v299, %v307
    %v311 = vadd.f32 %v297, %v304
    %v312 = vadd.f32 %v298, %v308
    %v313 = vmax.f32 %v311, 0.0
    %v314 = vmax.f32 %v312, 0.0
    %v315 = vpack.c.bf16 %v313, %v313
    %v316 = vpack.c.bf16 %v314, %v314
    %v317 = vld [vmem:[#allocation7] sm:$0xff]
    %v318 = vld [vmem:[#allocation7 + $0x8] sm:$0xff]
    %v319 = vld [vmem:[#allocation7 + $0x10] sm:$0xff]
    %v320 = vld [vmem:[#allocation7 + $0x18] sm:$0xff]
    %v321 = vld [vmem:[#allocation7 + $0x20] sm:$0xff]
    %v322 = vld [vmem:[#allocation7 + $0x28] sm:$0xff]
    %v323 = vld [vmem:[#allocation7 + $0x30] sm:$0xff]
    %v324 = vld [vmem:[#allocation7 + $0x38] sm:$0xff]
    %v325 = vld [vmem:[#allocation7 + $0x40] sm:$0xff]
    %v326 = vld [vmem:[#allocation7 + $0x48] sm:$0xff]
    %v327 = vld [vmem:[#allocation7 + $0x50] sm:$0xff]
    %v328 = vld [vmem:[#allocation7 + $0x58] sm:$0xff]
    %v329 = vld [vmem:[#allocation7 + $0x60] sm:$0xff]
    %v330 = vld [vmem:[#allocation7 + $0x68] sm:$0xff]
    %v331 = vld [vmem:[#allocation7 + $0x70] sm:$0xff]
    %v332 = vld [vmem:[#allocation7 + $0x78] sm:$0xff]
    %v333 = vld [vmem:[%s5] sm:$0x1]
    %v335 = vlaneseq
    %v336 = vshrl.u32 %v335, 7
    %v337 = vsub.s32 0, %v336
    %v338 = vrot.slane %v333, %v337
    %v356 = vunpack.c.l.b16 %v317
    %v357 = vunpack.c.h.b16 %v317
    %v358 = vunpack.c.l.b16 %v318
    %v359 = vunpack.c.h.b16 %v318
    %v360 = vunpack.c.l.b16 %v319
    %v361 = vunpack.c.h.b16 %v319
    %v362 = vunpack.c.l.b16 %v320
    %v363 = vunpack.c.h.b16 %v320
    %v364 = vunpack.c.l.b16 %v321
    %v365 = vunpack.c.h.b16 %v321
    %v366 = vunpack.c.l.b16 %v322
    %v367 = vunpack.c.h.b16 %v322
    %v368 = vunpack.c.l.b16 %v323
    %v369 = vunpack.c.h.b16 %v323
    %v370 = vunpack.c.l.b16 %v324
    %v371 = vunpack.c.h.b16 %v324
    %v372 = vunpack.c.l.b16 %v325
    %v373 = vunpack.c.h.b16 %v325
    %v374 = vunpack.c.l.b16 %v326
    %v375 = vunpack.c.h.b16 %v326
    %v376 = vunpack.c.l.b16 %v327
    %v377 = vunpack.c.h.b16 %v327
    %v378 = vunpack.c.l.b16 %v328
    %v379 = vunpack.c.h.b16 %v328
    %v380 = vunpack.c.l.b16 %v329
    %v381 = vunpack.c.h.b16 %v329
    %v382 = vunpack.c.l.b16 %v330
    %v383 = vunpack.c.h.b16 %v330
    %v384 = vunpack.c.l.b16 %v331
    %v385 = vunpack.c.h.b16 %v331
    %v386 = vunpack.c.l.b16 %v332
    %v387 = vunpack.c.h.b16 %v332
    %v388 = vpack.c.b16 %v358, %v356
    %v389 = vpack.c.b16 %v359, %v357
    %v390 = vpack.c.b16 %v362, %v360
    %v391 = vpack.c.b16 %v363, %v361
    %v392 = vpack.c.b16 %v366, %v364
    %v393 = vpack.c.b16 %v367, %v365
    %v394 = vpack.c.b16 %v370, %v368
    %v395 = vpack.c.b16 %v371, %v369
    %v396 = vpack.c.b16 %v374, %v372
    %v397 = vpack.c.b16 %v375, %v373
    %v398 = vpack.c.b16 %v378, %v376
    %v399 = vpack.c.b16 %v379, %v377
    %v400 = vpack.c.b16 %v382, %v380
    %v401 = vpack.c.b16 %v383, %v381
    %v402 = vpack.c.b16 %v386, %v384
    %v403 = vpack.c.b16 %v387, %v385
    %420 = vmatprep.subr.bf16.mxu0 %v403
    %421 = vmatpush1.bf16.xpose.msra.mxu0 %v402
    %422 = vmatprep.subr.bf16.mxu0 %v401
    %423 = vmatpush1.bf16.xpose.msra.mxu0 %v400
    %424 = vmatprep.subr.bf16.mxu0 %v399
    %425 = vmatpush1.bf16.xpose.msra.mxu0 %v398
    %426 = vmatprep.subr.bf16.mxu0 %v397
    %427 = vmatpush1.bf16.xpose.msra.mxu0 %v396
    %428 = vmatprep.subr.bf16.mxu0 %v395
    %429 = vmatpush1.bf16.xpose.msra.mxu0 %v394
    %430 = vmatprep.subr.bf16.mxu0 %v393
    %431 = vmatpush1.bf16.xpose.msra.mxu0 %v392
    %432 = vmatprep.subr.bf16.mxu0 %v391
    %433 = vmatpush1.bf16.xpose.msra.mxu0 %v390
    %434 = vmatprep.subr.bf16.mxu0 %v389
    %435 = vmatpush1.bf16.xpose.msra.mxu0 %v388
    %436 = vmatprep.subr.bf16.mxu0 0
    %437 = vmatpush2.bf16.xpose.msra.mxu0 0
    %438 = vmatprep.subr.bf16.mxu0 0
    %439 = vmatpush2.bf16.xpose.msra.mxu0 0
    %440 = vmatprep.subr.bf16.mxu0 0
    %441 = vmatpush2.bf16.xpose.msra.mxu0 0
    %442 = vmatprep.subr.bf16.mxu0 0
    %443 = vmatpush2.bf16.xpose.msra.mxu0 0
    %444 = vmatprep.subr.bf16.mxu0 0
    %445 = vmatpush2.bf16.xpose.msra.mxu0 0
    %446 = vmatprep.subr.bf16.mxu0 0
    %447 = vmatpush2.bf16.xpose.msra.mxu0 0
    %448 = vmatprep.subr.bf16.mxu0 0
    %449 = vmatpush2.bf16.xpose.msra.mxu0 0
    %450 = vmatprep.subr.bf16.mxu0 0
    %451 = vmatpush2.bf16.xpose.msra.mxu0 0
    %452 = vmatprep.mubr.bf16.mxu0 %v316
    %453 = vmatmul.mubr.bf16.gmra.mxu0 %v315
    %v454 = vpop.f32.mrf.mxu0
    %v455 = vadd.f32 %v338, %v454
    %v456 = vpop.f32.mrf.mxu0
    %v457 = vpop.f32.mrf.mxu0
    %v458 = vpop.f32.mrf.mxu0
    %459 = vdwg.mxu0
    %460 = vst [vmem:[#allocation8] sm:$0xff] %v455
    // Predicated region
    $region38: #{tpu_custom_call.1} parent=1 // pred_check
      _
    $region39: #{tpu_custom_call.1} parent=1 // pred_check_branch
      %462 = sbr.rel (0) target = $region41
    $region40: #{tpu_custom_call.1} parent=1 // pred_region
      %s464 = ssub.s32 128, 128
      %465 = vsyncadd [#allocation4], %s464
      %s467 = sshll.u32 [#allocation8], 4
      %s468 = int_to_ptr.vmem [resolvable:$true] %s467
      %470 = dma.vmem_to_hbm [thread:$0]  %s468, 128, %s6, [#allocation4]
    $region41: #{tpu_custom_call.1} parent=1 // pred_fallthru
      _
    // Predicated region
    $region42: #{tpu_custom_call.1} parent=1 // pred_check
      _
    $region43: #{tpu_custom_call.1} parent=1 // pred_check_branch
      %472 = sbr.rel (0) target = $region45
    $region44: #{tpu_custom_call.1} parent=1 // pred_region
      %473 = dma.done [#allocation4], 128
    $region45: #{tpu_custom_call.1} parent=1 // pred_fallthru
      _
    %474 = vsyncpa [#allocation3], 1
    %475 = vsyncpa [#allocation6], 1
    %476 = vsyncpa [#allocation4], 1

</llo_original>
